<compile_context>
chip_gen: v5e
topology: v5e:2x2
jax: 0.10.0
libtpu: 0.0.40
codegen_flags: <defaults>
</compile_context>

<pallas_src>
import functools

import jax
import jax.numpy as jnp
from jax.experimental import pallas as pl
from jax.experimental.pallas import tpu as pltpu


_TB_LANES_DEFAULT = 8192   # batch elements (lanes) per tile
_MIN_TILES = 2             # give v7x megacore >=2 tiles when the batch allows


def _round_up(x, m):
    return -(-x // m) * m


# ----------------------------------------------------------------------------
# Layer topology ([fan_in, fan_out] per Linear, in forward order)
# ----------------------------------------------------------------------------
def _layer_dims(input_dim):
    return (
        (input_dim, 14),   # encoder Linear(input_dim, 14) + ReLU
        (14, 7),           # encoder Linear(14, 7)         + ReLU
        (7, 3),            # encoder Linear(7, 3)            (no activation)
        (3, 7),            # decoder Linear(3, 7)          + ReLU
        (7, 14),           # decoder Linear(7, 14)         + ReLU
        (14, input_dim),   # decoder Linear(14, input_dim) + Sigmoid
    )


_RELU_LAYERS = (0, 1, 3, 4)  # layers followed by ReLU


def _row_offsets(dims):
    """Row offset of each layer's [W^T | b] block in the packed slab.

    Every block is padded to a multiple of 8 rows so all offsets are
    sublane-tile aligned and the in-kernel slices are zero-cost views.
    """
    offs, r = [], 0
    for _, fo in dims:
        offs.append(r)
        r += _round_up(fo, 8)
    return offs, r


# ----------------------------------------------------------------------------
# Kernel: full autoencoder forward on one lane-dense batch tile ([D, tb])
# ----------------------------------------------------------------------------
def _make_kernel(input_dim):
    dims = _layer_dims(input_dim)
    offs, _ = _row_offsets(dims)

    def kernel(xt_ref, w_ref, out_ref):
        # xt_ref : [input_dim, tb]  -- one batch element per lane (lane-dense)
        # w_ref  : packed weight slab, VMEM-resident across the whole grid
        # out_ref: [input_dim, tb]
        h = xt_ref[...]
        for li, (fi, fo) in enumerate(dims):
            r0 = offs[li]                              # multiple of 8 rows
            w_t = w_ref[r0:r0 + fo, :fi]               # [fo, fi], static slice
            b = w_ref[r0:r0 + fo, fi:fi + 1]           # [fo, 1] bias column
            h = jnp.dot(w_t, h, preferred_element_type=jnp.float32) + b
            if li in _RELU_LAYERS:
                h = jnp.maximum(h, 0.0)
        out_ref[...] = jax.nn.sigmoid(h)               # final decoder activation

    return kernel


# ----------------------------------------------------------------------------
# Parameter init (PyTorch-style uniform fan-in) and packing into one slab
# ----------------------------------------------------------------------------
def init_params(key, input_dim):
    dims = _layer_dims(input_dim)
    keys = jax.random.split(key, len(dims))
    params = []
    for k, (fi, fo) in zip(keys, dims):
        kw, kb = jax.random.split(k)
        bound = 1.0 / jnp.sqrt(fi)
        w = jax.random.uniform(kw, (fi, fo), jnp.float32, -bound, bound)  # [in, out]
        b = jax.random.uniform(kb, (1, fo), jnp.float32, -bound, bound)   # [1, out]
        params.append((w, b))
    return params


def pack_params(params, input_dim):
    """Pack every layer as an 8-row-aligned [W^T | b] block in one f32 slab.

    Rows = fan_out (padded to x8), columns = fan_in weight columns followed by
    the bias column, zero-padded to a single 128-lane tile.
    """
    dims = _layer_dims(input_dim)
    offs, rows = _row_offsets(dims)
    cols = _round_up(max(fi for fi, _ in dims) + 1, 128)
    slab = jnp.zeros((rows, cols), jnp.float32)
    for (w, b), (fi, fo), r0 in zip(params, dims, offs):
        slab = slab.at[r0:r0 + fo, :fi].set(w.T)       # W^T : [fan_out, fan_in]
        slab = slab.at[r0:r0 + fo, fi].set(b[0])       # bias column
    return slab


# ----------------------------------------------------------------------------
# Wrappers
# ----------------------------------------------------------------------------
def _pick_tile(batch, tb_lanes):
    """Largest lane-aligned tile <= tb_lanes; split into >=2 tiles (v7x
    megacore + pipelining) whenever the batch spans at least two lane tiles."""
    b128 = _round_up(batch, 128)
    tb = min(tb_lanes, b128)
    if b128 >= _MIN_TILES * 128 and pl.cdiv(batch, tb) < _MIN_TILES:
        tb = max(128, _round_up(pl.cdiv(b128, _MIN_TILES), 128))
    return tb


@functools.partial(jax.jit, static_argnames=("input_dim", "tb_lanes"))
def autoencoder_forward_t(xt, w_slab, *, input_dim, tb_lanes=_TB_LANES_DEFAULT):
    """Lane-dense fast path.  xt: [input_dim, B] f32 -> decoded [input_dim, B]."""
    d, batch = xt.shape
    assert d == input_dim
    dims = _layer_dims(input_dim)

    tb = _pick_tile(batch, tb_lanes)
    grid = (pl.cdiv(batch, tb),)   # ragged last tile clipped by Pallas (no pad copy)

    cost = pl.CostEstimate(
        flops=int(2 * batch * sum(fi * fo for fi, fo in dims)),
        transcendentals=int(batch * input_dim),                 # output sigmoid
        bytes_accessed=int(4 * (2 * batch * input_dim + w_slab.size)),
    )

    return pl.pallas_call(
        _make_kernel(input_dim),
        out_shape=jax.ShapeDtypeStruct((input_dim, batch), jnp.float32),
        grid=grid,
        in_specs=[
            pl.BlockSpec((input_dim, tb), lambda i: (0, i)),    # batch tile (lanes)
            pl.BlockSpec(w_slab.shape, lambda i: (0, 0)),       # slab stays resident
        ],
        out_specs=pl.BlockSpec((input_dim, tb), lambda i: (0, i)),
        compiler_params=pltpu.CompilerParams(
            dimension_semantics=("parallel",)),                 # megacore on v7x
        cost_estimate=cost,
    )(xt, w_slab)


@functools.partial(jax.jit, static_argnames=("input_dim", "tb_lanes"))
def autoencoder_forward(x, w_slab, *, input_dim, tb_lanes=_TB_LANES_DEFAULT):
    """PyTorch-module layout: x [B, input_dim] -> decoded [B, input_dim].

    The edge transposes are boundary layout plumbing only; callers that can
    keep activations feature-major ([input_dim, B]) should call
    autoencoder_forward_t directly and skip them entirely.
    """
    out_t = autoencoder_forward_t(x.T, w_slab, input_dim=input_dim,
                                  tb_lanes=tb_lanes)
    return out_t.T


# ----------------------------------------------------------------------------
# Pure-JAX reference for correctness checking
# ----------------------------------------------------------------------------
def autoencoder_ref(x, params):
    h = x
    for li, (w, b) in enumerate(params):
        h = h @ w + b
        if li in _RELU_LAYERS:
            h = jnp.maximum(h, 0.0)
    return jax.nn.sigmoid(h)


if __name__ == "__main__":
    B = 512
    INPUT_DIM = 16

    key = jax.random.PRNGKey(0)
    k_params, k_x = jax.random.split(key)

    params = init_params(k_params, INPUT_DIM)
    w_slab = pack_params(params, INPUT_DIM)
    x = jax.random.uniform(k_x, (B, INPUT_DIM), jnp.float32)   # data in [0, 1)

    ref = autoencoder_ref(x, params)

    # Default config: two lane-dense tiles of 256 batch elements each.
    decoded = autoencoder_forward(x, w_slab, input_dim=INPUT_DIM)
    jax.block_until_ready(decoded)
    assert decoded.shape == (B, INPUT_DIM)
    assert jnp.allclose(decoded, ref, atol=1e-5, rtol=1e-5)

    # Small tiles -> 4-step grid: exercises pipelining with the resident slab.
    decoded_small = autoencoder_forward(x, w_slab, input_dim=INPUT_DIM,
                                        tb_lanes=128)
    jax.block_until_ready(decoded_small)
    assert jnp.allclose(decoded_small, ref, atol=1e-5, rtol=1e-5)

    print("KERNEL_OK")
</pallas_src>

<mosaic_0001>
module attributes {stable_mosaic.version = 11 : i64} {
  func.func @kernel(%arg0: i32, %arg1: memref<16x256xf32, #tpu.memory_space<vmem>>, %arg2: memref<72x128xf32, #tpu.memory_space<vmem>>, %arg3: memref<16x256xf32, #tpu.memory_space<vmem>>) attributes {dimension_semantics = [#tpu.dimension_semantics<parallel>], iteration_bounds = array<i64: 2>, scalar_prefetch = 0 : i64, scratch_operands = 0 : i64, tpu.core_type = #tpu.core_type<tc>, window_params = [{transform_indices = @transform_0, window_bounds = array<i64: 16, 256>}, {pipeline_mode = #tpu.pipeline_mode<synchronous>, transform_indices = @transform_1, window_bounds = array<i64: 72, 128>}, {transform_indices = @transform_2, window_bounds = array<i64: 16, 256>}]} {
    %c0 = arith.constant 0 : index
    %c0_0 = arith.constant 0 : index
    %0 = vector.load %arg1[%c0, %c0_0] : memref<16x256xf32, #tpu.memory_space<vmem>>, vector<16x256xf32>
    %c0_1 = arith.constant 0 : index
    %c0_2 = arith.constant 0 : index
    %1 = vector.load %arg2[%c0_1, %c0_2] : memref<72x128xf32, #tpu.memory_space<vmem>>, vector<14x16xf32>
    %c0_3 = arith.constant 0 : index
    %c16 = arith.constant 16 : index
    %2 = vector.load %arg2[%c0_3, %c16] : memref<72x128xf32, #tpu.memory_space<vmem>>, vector<14x1xf32>
    %cst = arith.constant dense<0.000000e+00> : vector<14x256xf32>
    %3 = tpu.matmul %1, %0, %cst {dimension_numbers = #tpu.dot_dimension_numbers<[1], [0], [0], [1], [0, 0, 1, 1], [], []>} : vector<14x16xf32>, vector<16x256xf32>, vector<14x256xf32> -> vector<14x256xf32>
    %4 = vector.broadcast %2 : vector<14x1xf32> to vector<14x256xf32>
    %5 = arith.addf %3, %4 : vector<14x256xf32>
    %cst_4 = arith.constant 0.000000e+00 : f32
    %6 = vector.broadcast %cst_4 : f32 to vector<14x256xf32>
    %7 = arith.maximumf %5, %6 : vector<14x256xf32>
    %c16_5 = arith.constant 16 : index
    %c0_6 = arith.constant 0 : index
    %8 = vector.load %arg2[%c16_5, %c0_6] : memref<72x128xf32, #tpu.memory_space<vmem>>, vector<7x14xf32>
    %c16_7 = arith.constant 16 : index
    %c14 = arith.constant 14 : index
    %9 = vector.load %arg2[%c16_7, %c14] : memref<72x128xf32, #tpu.memory_space<vmem>>, vector<7x1xf32>
    %cst_8 = arith.constant dense<0.000000e+00> : vector<7x256xf32>
    %10 = tpu.matmul %8, %7, %cst_8 {dimension_numbers = #tpu.dot_dimension_numbers<[1], [0], [0], [1], [0, 0, 1, 1], [], []>} : vector<7x14xf32>, vector<14x256xf32>, vector<7x256xf32> -> vector<7x256xf32>
    %11 = vector.broadcast %9 : vector<7x1xf32> to vector<7x256xf32>
    %12 = arith.addf %10, %11 : vector<7x256xf32>
    %cst_9 = arith.constant 0.000000e+00 : f32
    %13 = vector.broadcast %cst_9 : f32 to vector<7x256xf32>
    %14 = arith.maximumf %12, %13 : vector<7x256xf32>
    %c24 = arith.constant 24 : index
    %c0_10 = arith.constant 0 : index
    %15 = vector.load %arg2[%c24, %c0_10] : memref<72x128xf32, #tpu.memory_space<vmem>>, vector<3x7xf32>
    %c24_11 = arith.constant 24 : index
    %c7 = arith.constant 7 : index
    %16 = vector.load %arg2[%c24_11, %c7] : memref<72x128xf32, #tpu.memory_space<vmem>>, vector<3x1xf32>
    %cst_12 = arith.constant dense<0.000000e+00> : vector<3x256xf32>
    %17 = tpu.matmul %15, %14, %cst_12 {dimension_numbers = #tpu.dot_dimension_numbers<[1], [0], [0], [1], [0, 0, 1, 1], [], []>} : vector<3x7xf32>, vector<7x256xf32>, vector<3x256xf32> -> vector<3x256xf32>
    %18 = vector.broadcast %16 : vector<3x1xf32> to vector<3x256xf32>
    %19 = arith.addf %17, %18 : vector<3x256xf32>
    %c32 = arith.constant 32 : index
    %c0_13 = arith.constant 0 : index
    %20 = vector.load %arg2[%c32, %c0_13] : memref<72x128xf32, #tpu.memory_space<vmem>>, vector<7x3xf32>
    %c32_14 = arith.constant 32 : index
    %c3 = arith.constant 3 : index
    %21 = vector.load %arg2[%c32_14, %c3] : memref<72x128xf32, #tpu.memory_space<vmem>>, vector<7x1xf32>
    %cst_15 = arith.constant dense<0.000000e+00> : vector<7x256xf32>
    %22 = tpu.matmul %20, %19, %cst_15 {dimension_numbers = #tpu.dot_dimension_numbers<[1], [0], [0], [1], [0, 0, 1, 1], [], []>} : vector<7x3xf32>, vector<3x256xf32>, vector<7x256xf32> -> vector<7x256xf32>
    %23 = vector.broadcast %21 : vector<7x1xf32> to vector<7x256xf32>
    %24 = arith.addf %22, %23 : vector<7x256xf32>
    %cst_16 = arith.constant 0.000000e+00 : f32
    %25 = vector.broadcast %cst_16 : f32 to vector<7x256xf32>
    %26 = arith.maximumf %24, %25 : vector<7x256xf32>
    %c40 = arith.constant 40 : index
    %c0_17 = arith.constant 0 : index
    %27 = vector.load %arg2[%c40, %c0_17] : memref<72x128xf32, #tpu.memory_space<vmem>>, vector<14x7xf32>
    %c40_18 = arith.constant 40 : index
    %c7_19 = arith.constant 7 : index
    %28 = vector.load %arg2[%c40_18, %c7_19] : memref<72x128xf32, #tpu.memory_space<vmem>>, vector<14x1xf32>
    %cst_20 = arith.constant dense<0.000000e+00> : vector<14x256xf32>
    %29 = tpu.matmul %27, %26, %cst_20 {dimension_numbers = #tpu.dot_dimension_numbers<[1], [0], [0], [1], [0, 0, 1, 1], [], []>} : vector<14x7xf32>, vector<7x256xf32>, vector<14x256xf32> -> vector<14x256xf32>
    %30 = vector.broadcast %28 : vector<14x1xf32> to vector<14x256xf32>
    %31 = arith.addf %29, %30 : vector<14x256xf32>
    %cst_21 = arith.constant 0.000000e+00 : f32
    %32 = vector.broadcast %cst_21 : f32 to vector<14x256xf32>
    %33 = arith.maximumf %31, %32 : vector<14x256xf32>
    %c56 = arith.constant 56 : index
    %c0_22 = arith.constant 0 : index
    %34 = vector.load %arg2[%c56, %c0_22] : memref<72x128xf32, #tpu.memory_space<vmem>>, vector<16x14xf32>
    %c56_23 = arith.constant 56 : index
    %c14_24 = arith.constant 14 : index
    %35 = vector.load %arg2[%c56_23, %c14_24] : memref<72x128xf32, #tpu.memory_space<vmem>>, vector<16x1xf32>
    %cst_25 = arith.constant dense<0.000000e+00> : vector<16x256xf32>
    %36 = tpu.matmul %34, %33, %cst_25 {dimension_numbers = #tpu.dot_dimension_numbers<[1], [0], [0], [1], [0, 0, 1, 1], [], []>} : vector<16x14xf32>, vector<14x256xf32>, vector<16x256xf32> -> vector<16x256xf32>
    %37 = vector.broadcast %35 : vector<16x1xf32> to vector<16x256xf32>
    %38 = arith.addf %36, %37 : vector<16x256xf32>
    %39 = arith.negf %38 : vector<16x256xf32>
    %40 = math.exp %39 : vector<16x256xf32>
    %cst_26 = arith.constant 1.000000e+00 : f32
    %41 = vector.broadcast %cst_26 : f32 to vector<16x256xf32>
    %42 = arith.addf %41, %40 : vector<16x256xf32>
    %43 = arith.divf %41, %42 : vector<16x256xf32>
    %c0_27 = arith.constant 0 : index
    %c0_28 = arith.constant 0 : index
    %44 = vector.load %arg3[%c0_27, %c0_28] : memref<16x256xf32, #tpu.memory_space<vmem>>, vector<16x256xf32>
    tpu.vector_store %arg3[%c0_27, %c0_28], %43 {strides = array<i32>} : memref<16x256xf32, #tpu.memory_space<vmem>>, vector<16x256xf32>,
    return
  }
  func.func @transform_0(%arg0: i32) -> (i32, i32) {
    %c0_i32 = arith.constant 0 : i32
    %c0_i32_0 = arith.constant 0 : i32
    return %c0_i32, %arg0 : i32, i32
  }
  func.func @transform_1(%arg0: i32) -> (i32, i32) {
    %c0_i32 = arith.constant 0 : i32
    %c0_i32_0 = arith.constant 0 : i32
    %c0_i32_1 = arith.constant 0 : i32
    return %c0_i32, %c0_i32_0 : i32, i32
  }
  func.func @transform_2(%arg0: i32) -> (i32, i32) {
    %c0_i32 = arith.constant 0 : i32
    %c0_i32_0 = arith.constant 0 : i32
    return %c0_i32, %arg0 : i32, i32
  }
}

</mosaic_0001>

<llo_original>
// kernel: autoencoder_forward_t.1
$region0: #{autoencoder_forward_t.1}
  #allocation0 [shape = 'u32[]', space=smem, size = 0x4, offset = 0x4, fixed_abs, tag = 'smem constant byte address 0x4 - core index']
  #allocation1 [shape = 'u32[72,128]{1,0:T(1,128)}', space=vmem, size = 0x9000, scoped, tag = 'internal scratch']
  %s0 = inlined_call_operand.hbm [shape: f32[16,512], index: 0, kind: input, shape index: {}]
  %s1 = inlined_call_operand.hbm [shape: f32[72,128], index: 1, kind: input, shape index: {}]
  %s2 = inlined_call_operand.hbm [shape: f32[16,512], index: 2, kind: output, shape index: {}]
  %s3 = sld [smem:[#allocation0]]
  $region49: #{autoencoder_forward_t.1} parent=0
    _
  %s5 = ssub.s32 1, %s3
  %s6 = scalar_select 0, %s5, %s3
  $region1: #{autoencoder_forward_t.1} parent=0
    #allocation2 [shape = 'u8[32768]{0}', space=vmem, size = 0x8000, scoped, tag = 'input window, operand 0']
    #allocation3 [shape = 's32[2]{0}', space=sflag, size = 0x8, scoped, tag = 'scoped memory for autoencoder_forward_t.1']
    #allocation4 [shape = 's32[2]{0}', space=sflag, size = 0x8, scoped, tag = 'scoped memory for autoencoder_forward_t.1']
    #allocation5 [shape = 'u8[36864]{0}', space=vmem, size = 0x9000, scoped, tag = 'input window, operand 1, single buffered']
    #allocation6 [shape = 's32[1]{0}', space=sflag, size = 0x4, scoped, tag = 'scoped memory for autoencoder_forward_t.1']
    #allocation7 [shape = 'u8[32768]{0}', space=vmem, size = 0x8000, scoped, tag = 'output window, operand 0']
    %7 = vsyncpa [#allocation3], 0
    %s8 = scalar_lea.sflag [#allocation3], 1
    %9 = vsyncpa %s8, 0
    %10 = vsyncpa [#allocation6], 0
    %11 = vsyncpa [#allocation4], 0
    %s12 = scalar_lea.sflag [#allocation4], 1
    %13 = vsyncpa %s12, 0
    loop: start=0, step=1, limit=4
    $region2: #{autoencoder_forward_t.1} parent=1 // loop_pre_header
      _
    $region3: #{autoencoder_forward_t.1} parent=1 // loop_header
      %s15 = sphi 0, %s19
      %p16 = scmp.ge.s32.totalorder %s15, 4
      %s25 = sphi 0, %s27
      %s28 = sphi 0, %s25
      %s29 = sphi 0, %s28
      %s45 = sphi 0, %s29
      %s49 = sphi 0, %s49
      %s51 = sphi 0, %s49
      %s52 = sphi 0, %s51
      %s66 = sphi 0, %s52
      %s72 = sphi 0, %s74
      %s75 = sphi 0, %s72
      %s76 = sphi 0, %s75
      %s92 = sphi 0, %s76
    $region4: #{autoencoder_forward_t.1} parent=1 // loop_header_branch
      %18 = sbr.rel (%p16) target = $region8
    $region5: #{autoencoder_forward_t.1} parent=1 // loop_body
      %s20 = ssub.s32 %s15, 1
      %s21 = ssub.s32 %s15, 2
      %s22 = sadd.s32 %s15, 1
      %s23 = ssub.s32 %s15, %s22
      %p24 = scmp.eq.s32.totalorder %s23, 0
      %s26 = sadd.s32 %s25, 1
      %s27 = scalar_select %p24, %s25, %s26
      %p30 = pneg %p24
      %p31 = scmp.eq.s32.totalorder %s15, 1
      %p32 = por %p30, %p31
      %p33 = scmp.ne.s32.totalorder %s25, %s28
      %p34 = scmp.eq.s32.totalorder %s15, 0
      %p35 = por %p33, %p34
      %p36 = scmp.ne.s32.totalorder %s25, %s28
      %p37 = scmp.eq.s32.totalorder %s20, 1
      %p38 = por %p36, %p37
      %p39 = scmp.ne.s32.totalorder %s28, %s29
      %p40 = scmp.eq.s32.totalorder %s20, 0
      %p41 = por %p39, %p40
      %p42 = scmp.ne.s32.totalorder %s28, %s29
      %p43 = scmp.eq.s32.totalorder %s21, 1
      %p44 = por %p42, %p43
      %p46 = scmp.ne.s32.totalorder %s29, %s45
      %p47 = scmp.eq.s32.totalorder %s21, 0
      %p48 = por %p46, %p47
      %s50 = sadd.s32 %s49, 1
      %p53 = scmp.eq.s32.totalorder %s15, 1
      %p54 = scmp.ne.s32.totalorder %s49, %s51
      %p55 = scmp.eq.s32.totalorder %s15, 0
      %p56 = por %p54, %p55
      %p57 = scmp.ne.s32.totalorder %s49, %s51
      %p58 = scmp.eq.s32.totalorder %s20, 1
      %p59 = por %p57, %p58
      %p60 = scmp.ne.s32.totalorder %s51, %s52
      %p61 = scmp.eq.s32.totalorder %s20, 0
      %p62 = por %p60, %p61
      %p63 = scmp.ne.s32.totalorder %s51, %s52
      %p64 = scmp.eq.s32.totalorder %s21, 1
      %p65 = por %p63, %p64
      %p67 = scmp.ne.s32.totalorder %s52, %s66
      %p68 = scmp.eq.s32.totalorder %s21, 0
      %p69 = por %p67, %p68
      %s70 = ssub.s32 %s15, %s22
      %p71 = scmp.eq.s32.totalorder %s70, 0
      %s73 = sadd.s32 %s72, 1
      %s74 = scalar_select %p71, %s72, %s73
      %p77 = pneg %p71
      %p78 = scmp.eq.s32.totalorder %s15, 1
      %p79 = por %p77, %p78
      %p80 = scmp.ne.s32.totalorder %s72, %s75
      %p81 = scmp.eq.s32.totalorder %s15, 0
      %p82 = por %p80, %p81
      %p83 = scmp.ne.s32.totalorder %s72, %s75
      %p84 = scmp.eq.s32.totalorder %s20, 1
      %p85 = por %p83, %p84
      %p86 = scmp.ne.s32.totalorder %s75, %s76
      %p87 = scmp.eq.s32.totalorder %s20, 0
      %p88 = por %p86, %p87
      %p89 = scmp.ne.s32.totalorder %s75, %s76
      %p90 = scmp.eq.s32.totalorder %s21, 1
      %p91 = por %p89, %p90
      %p93 = scmp.ne.s32.totalorder %s76, %s92
      %p94 = scmp.eq.s32.totalorder %s21, 0
      %p95 = por %p93, %p94
      %p96 = scmp.le.s32.totalorder 1, %s15
      %p97 = scmp.lt.s32.totalorder %s15, 3
      %p98 = pnand %p96, %p97
      %p99 = pneg %p98
      // Predicated region
      $region9: #{autoencoder_forward_t.1} parent=5 // pred_check
        _
      $region10: #{autoencoder_forward_t.1} parent=5 // pred_check_branch
        %101 = sbr.rel (%p98) target = $region12
      $region11: #{autoencoder_forward_t.1} parent=5 // pred_region
        %s102 = ssub.s32 %s15, 1
        // Predicated region
        $region13: #{autoencoder_forward_t.1} parent=11 // pred_check
          %p103 = pneg %p62
        $region14: #{autoencoder_forward_t.1} parent=11 // pred_check_branch
          %105 = sbr.rel (%p103) target = $region16
        $region15: #{autoencoder_forward_t.1} parent=11 // pred_region
          %107 = vsyncadd [#allocation6], 0
          %s108 = sshll.u32 %s1, 4
          %s109 = int_to_ptr.hbm [resolvable:$true] %s108
          %s110 = sshll.u32 [#allocation5], 4
          %s111 = int_to_ptr.vmem [resolvable:$true] %s110
          %116 = dma.hbm_to_vmem [thread:$0]  %s109, 1152, %s111, [#allocation6], 128, 128, 8
        $region16: #{autoencoder_forward_t.1} parent=11 // pred_fallthru
          _
      $region12: #{autoencoder_forward_t.1} parent=5 // pred_fallthru
        _
      %p117 = scmp.lt.s32.totalorder %s15, 2
      // Predicated region
      $region17: #{autoencoder_forward_t.1} parent=5 // pred_check
        %p118 = pneg %p117
      $region18: #{autoencoder_forward_t.1} parent=5 // pred_check_branch
        %120 = sbr.rel (%p118) target = $region20
      $region19: #{autoencoder_forward_t.1} parent=5 // pred_region
        // Predicated region
        $region21: #{autoencoder_forward_t.1} parent=19 // pred_check
          %p121 = pneg %p35
        $region22: #{autoencoder_forward_t.1} parent=19 // pred_check_branch
          %123 = sbr.rel (%p121) target = $region24
        $region23: #{autoencoder_forward_t.1} parent=19 // pred_region
          %s124 = sand.u32 %s25, 1
          %s125 = scalar_lea.sflag [#allocation3], %s124
          %s126 = sand.u32 %s25, 1
          %s127 = smul.addr %s126, 32
          %s128 = scalar_lea.vmem [#allocation2], %s127
          %s129 = smul.u32 2, %s15
          %131 = vsyncadd %s125, 0
          %s132 = smul.addr %s129, 8
          %s133 = scalar_lea.hbm %s0, %s132
          %s134 = sshll.u32 %s133, 4
          %s135 = int_to_ptr.hbm [resolvable:$true] %s134
          %s136 = sshll.u32 %s128, 4
          %s137 = int_to_ptr.vmem [resolvable:$true] %s136
          %142 = dma.hbm_to_vmem [thread:$0]  %s135, 512, %s137, %s125, 512, 256, 16
        $region24: #{autoencoder_forward_t.1} parent=19 // pred_fallthru
          _
      $region20: #{autoencoder_forward_t.1} parent=5 // pred_fallthru
        _
      %p143 = scmp.le.s32.totalorder 1, %s15
      %p144 = scmp.lt.s32.totalorder %s15, 3
      %p145 = pnand %p143, %p144
      %p146 = pneg %p145
      // Predicated region
      $region25: #{autoencoder_forward_t.1} parent=5 // pred_check
        _
      $region26: #{autoencoder_forward_t.1} parent=5 // pred_check_branch
        %148 = sbr.rel (%p145) target = $region28
      $region27: #{autoencoder_forward_t.1} parent=5 // pred_region
        %s149 = ssub.s32 %s15, 1
        %s150 = sand.u32 %s28, 1
        %s151 = scalar_lea.sflag [#allocation3], %s150
        %s152 = sand.u32 %s28, 1
        %s153 = smul.addr %s152, 32
        %s154 = scalar_lea.vmem [#allocation2], %s153
        // Predicated region
        $region29: #{autoencoder_forward_t.1} parent=27 // pred_check
          %p155 = pneg %p41
        $region30: #{autoencoder_forward_t.1} parent=27 // pred_check_branch
          %157 = sbr.rel (%p155) target = $region32
        $region31: #{autoencoder_forward_t.1} parent=27 // pred_region
          %159 = dma.done %s151, 512
        $region32: #{autoencoder_forward_t.1} parent=27 // pred_fallthru
          _
        // Predicated region
        $region33: #{autoencoder_forward_t.1} parent=27 // pred_check
          %p160 = pneg %p62
        $region34: #{autoencoder_forward_t.1} parent=27 // pred_check_branch
          %162 = sbr.rel (%p160) target = $region36
        $region35: #{autoencoder_forward_t.1} parent=27 // pred_region
          %164 = dma.done [#allocation6], 1152
        $region36: #{autoencoder_forward_t.1} parent=27 // pred_fallthru
          _
        %s165 = sand.u32 %s28, 1
        %s166 = scalar_lea.sflag [#allocation3], %s165
        %s167 = sand.u32 %s28, 1
        %s168 = smul.addr %s167, 32
        %s169 = scalar_lea.vmem [#allocation2], %s168
        %p170 = pneg %p41
        %p171 = pneg %p38
        %p172 = pneg %p62
        %p173 = pneg %p59
        %p174 = pneg %p88
        %p175 = pneg %p85
        %s176 = sand.u32 %s75, 1
        %s177 = scalar_lea.sflag [#allocation4], %s176
        %s178 = sand.u32 %s75, 1
        %s179 = smul.addr %s178, 32
        %s180 = scalar_lea.vmem [#allocation7], %s179
        %s181 = smul.u32 2, %s20
        %s182 = smul.u32 2, %s20
        %v183 = vld [vmem:[%s154] sm:$0xff]
        %v184 = vld [vmem:[%s154 + $0x8] sm:$0xff]
        %v185 = vld [vmem:[%s154 + $0x10] sm:$0xff]
        %v186 = vld [vmem:[%s154 + $0x18] sm:$0xff]
        %v187 = vld [vmem:[#allocation5] sm:$0xff]
        %v188 = vld [vmem:[#allocation5 + $0x8] sm:$0x3f]
        %190 = vset.pattern.permute.xlu0 16
        %191 = vperm.xlu0 %190, %v187
        %v192 = vpop.permute.xlu0 %191
        %195 = vset.pattern.permute.xlu0 16
        %196 = vperm.xlu0 %195, %v188
        %v197 = vpop.permute.xlu0 %196
        %vm199 = vcmask 130048
        %v200 = vsel %vm199, %v187, 0
        %v202 = vsel %vm199, %v188, 0
        %204 = vmatpush.msra.mxu0 0.0
        %205 = vmatpush.msra.mxu0 0.0
        %206 = vmatpush.msra.mxu0 0.0
        %207 = vmatpush.msra.mxu0 0.0
        %208 = vmatpush.msra.mxu0 0.0
        %209 = vmatpush.msra.mxu0 0.0
        %210 = vmatpush.msra.mxu0 0.0
        %211 = vmatpush.msra.mxu0 0.0
        %212 = vmatpush.msra.mxu0 0.0
        %213 = vmatpush.msra.mxu0 0.0
        %214 = vmatpush.msra.mxu0 0.0
        %215 = vmatpush.msra.mxu0 0.0
        %216 = vmatpush.msra.mxu0 0.0
        %217 = vmatpush.msra.mxu0 0.0
        %218 = vmatpush.msra.mxu0 %v185
        %219 = vmatpush.msra.mxu0 %v183
        %220 = vmatmul.f32.gmra.mxu0 %v200
        %v221 = vpop.f32.mrf.mxu0
        %v222 = vadd.f32 %v192, %v221
        %223 = vmatmul.f32.gmra.mxu0 %v202
        %v224 = vpop.f32.mrf.mxu0
        %v225 = vadd.f32 %v197, %v224
        %226 = vdwg.mxu0
        %227 = vmatpush.msra.mxu0 0.0
        %228 = vmatpush.msra.mxu0 0.0
        %229 = vmatpush.msra.mxu0 0.0
        %230 = vmatpush.msra.mxu0 0.0
        %231 = vmatpush.msra.mxu0 0.0
        %232 = vmatpush.msra.mxu0 0.0
        %233 = vmatpush.msra.mxu0 0.0
        %234 = vmatpush.msra.mxu0 0.0
        %235 = vmatpush.msra.mxu0 0.0
        %236 = vmatpush.msra.mxu0 0.0
        %237 = vmatpush.msra.mxu0 0.0
        %238 = vmatpush.msra.mxu0 0.0
        %239 = vmatpush.msra.mxu0 0.0
        %240 = vmatpush.msra.mxu0 0.0
        %241 = vmatpush.msra.mxu0 %v186
        %242 = vmatpush.msra.mxu0 %v184
        %243 = vmatmul.f32.gmra.mxu0 %v200
        %v244 = vpop.f32.mrf.mxu0
        %v245 = vadd.f32 %v192, %v244
        %246 = vmatmul.f32.gmra.mxu0 %v202
        %v247 = vpop.f32.mrf.mxu0
        %v248 = vadd.f32 %v197, %v247
        %249 = vdwg.mxu0
        %v250 = vmax.f32 %v222, 0.0
        %v251 = vmax.f32 %v245, 0.0
        %v252 = vmax.f32 %v225, 0.0
        %v253 = vmax.f32 %v248, 0.0
        %v254 = vld [vmem:[#allocation5 + $0x10] sm:$0x7f]
        %256 = vset.pattern.permute.xlu0 14
        %257 = vperm.xlu0 %256, %v254
        %v258 = vpop.permute.xlu0 %257
        %vm260 = vcmask 113664
        %v261 = vsel %vm260, %v254, 0
        %vm263 = vcmask 1045504
        %v265 = vsel %vm263, %v252, 0
        %v268 = vsel %vm263, %v253, 0
        %270 = vmatpush.msra.mxu0 0.0
        %271 = vmatpush.msra.mxu0 0.0
        %272 = vmatpush.msra.mxu0 0.0
        %273 = vmatpush.msra.mxu0 0.0
        %274 = vmatpush.msra.mxu0 0.0
        %275 = vmatpush.msra.mxu0 0.0
        %276 = vmatpush.msra.mxu0 0.0
        %277 = vmatpush.msra.mxu0 0.0
        %278 = vmatpush.msra.mxu0 0.0
        %279 = vmatpush.msra.mxu0 0.0
        %280 = vmatpush.msra.mxu0 0.0
        %281 = vmatpush.msra.mxu0 0.0
        %282 = vmatpush.msra.mxu0 0.0
        %283 = vmatpush.msra.mxu0 0.0
        %284 = vmatpush.msra.mxu0 %v265
        %285 = vmatpush.msra.mxu0 %v250
        %286 = vmatmul.f32.gmra.mxu0 %v261
        %v287 = vpop.f32.mrf.mxu0
        %v288 = vadd.f32 %v258, %v287
        %289 = vdwg.mxu0
        %290 = vmatpush.msra.mxu0 0.0
        %291 = vmatpush.msra.mxu0 0.0
        %292 = vmatpush.msra.mxu0 0.0
        %293 = vmatpush.msra.mxu0 0.0
        %294 = vmatpush.msra.mxu0 0.0
        %295 = vmatpush.msra.mxu0 0.0
        %296 = vmatpush.msra.mxu0 0.0
        %297 = vmatpush.msra.mxu0 0.0
        %298 = vmatpush.msra.mxu0 0.0
        %299 = vmatpush.msra.mxu0 0.0
        %300 = vmatpush.msra.mxu0 0.0
        %301 = vmatpush.msra.mxu0 0.0
        %302 = vmatpush.msra.mxu0 0.0
        %303 = vmatpush.msra.mxu0 0.0
        %304 = vmatpush.msra.mxu0 %v268
        %305 = vmatpush.msra.mxu0 %v251
        %306 = vmatmul.f32.gmra.mxu0 %v261
        %v307 = vpop.f32.mrf.mxu0
        %v308 = vadd.f32 %v258, %v307
        %309 = vdwg.mxu0
        %v310 = vmax.f32 %v288, 0.0
        %v311 = vmax.f32 %v308, 0.0
        %v312 = vld [vmem:[#allocation5 + $0x18] sm:$0x7]
        %314 = vset.pattern.permute.xlu0 7
        %315 = vperm.xlu0 %314, %v312
        %v316 = vpop.permute.xlu0 %315
        %vm318 = vcmask 56320
        %v319 = vsel %vm318, %v312, 0
        %vm321 = vcmask 1046528
        %v323 = vsel %vm321, %v310, 0
        %v326 = vsel %vm321, %v311, 0
        %328 = vmatpush.msra.mxu0 0.0
        %329 = vmatpush.msra.mxu0 0.0
        %330 = vmatpush.msra.mxu0 0.0
        %331 = vmatpush.msra.mxu0 0.0
        %332 = vmatpush.msra.mxu0 0.0
        %333 = vmatpush.msra.mxu0 0.0
        %334 = vmatpush.msra.mxu0 0.0
        %335 = vmatpush.msra.mxu0 0.0
        %336 = vmatpush.msra.mxu0 0.0
        %337 = vmatpush.msra.mxu0 0.0
        %338 = vmatpush.msra.mxu0 0.0
        %339 = vmatpush.msra.mxu0 0.0
        %340 = vmatpush.msra.mxu0 0.0
        %341 = vmatpush.msra.mxu0 0.0
        %342 = vmatpush.msra.mxu0 0.0
        %343 = vmatpush.msra.mxu0 %v323
        %344 = vmatmul.f32.gmra.mxu0 %v319
        %v345 = vpop.f32.mrf.mxu0
        %v346 = vadd.f32 %v316, %v345
        %347 = vdwg.mxu0
        %348 = vmatpush.msra.mxu0 0.0
        %349 = vmatpush.msra.mxu0 0.0
        %350 = vmatpush.msra.mxu0 0.0
        %351 = vmatpush.msra.mxu0 0.0
        %352 = vmatpush.msra.mxu0 0.0
        %353 = vmatpush.msra.mxu0 0.0
        %354 = vmatpush.msra.mxu0 0.0
        %355 = vmatpush.msra.mxu0 0.0
        %356 = vmatpush.msra.mxu0 0.0
        %357 = vmatpush.msra.mxu0 0.0
        %358 = vmatpush.msra.mxu0 0.0
        %359 = vmatpush.msra.mxu0 0.0
        %360 = vmatpush.msra.mxu0 0.0
        %361 = vmatpush.msra.mxu0 0.0
        %362 = vmatpush.msra.mxu0 0.0
        %363 = vmatpush.msra.mxu0 %v326
        %364 = vmatmul.f32.gmra.mxu0 %v319
        %v365 = vpop.f32.mrf.mxu0
        %v366 = vadd.f32 %v316, %v365
        %367 = vdwg.mxu0
        %v368 = vld [vmem:[#allocation5 + $0x20] sm:$0x7f]
        %370 = vset.pattern.permute.xlu0 3
        %371 = vperm.xlu0 %370, %v368
        %v372 = vpop.permute.xlu0 %371
        %vm374 = vcmask 23552
        %v375 = vsel %vm374, %v368, 0
        %vm377 = vcmask 1042432
        %v379 = vsel %vm377, %v346, 0
        %v382 = vsel %vm377, %v366, 0
        %384 = vmatpush.msra.mxu0 0.0
        %385 = vmatpush.msra.mxu0 0.0
        %386 = vmatpush.msra.mxu0 0.0
        %387 = vmatpush.msra.mxu0 0.0
        %388 = vmatpush.msra.mxu0 0.0
        %389 = vmatpush.msra.mxu0 0.0
        %390 = vmatpush.msra.mxu0 0.0
        %391 = vmatpush.msra.mxu0 0.0
        %392 = vmatpush.msra.mxu0 0.0
        %393 = vmatpush.msra.mxu0 0.0
        %394 = vmatpush.msra.mxu0 0.0
        %395 = vmatpush.msra.mxu0 0.0
        %396 = vmatpush.msra.mxu0 0.0
        %397 = vmatpush.msra.mxu0 0.0
        %398 = vmatpush.msra.mxu0 0.0
        %399 = vmatpush.msra.mxu0 %v379
        %400 = vmatmul.f32.gmra.mxu0 %v375
        %v401 = vpop.f32.mrf.mxu0
        %v402 = vadd.f32 %v372, %v401
        %403 = vdwg.mxu0
        %404 = vmatpush.msra.mxu0 0.0
        %405 = vmatpush.msra.mxu0 0.0
        %406 = vmatpush.msra.mxu0 0.0
        %407 = vmatpush.msra.mxu0 0.0
        %408 = vmatpush.msra.mxu0 0.0
        %409 = vmatpush.msra.mxu0 0.0
        %410 = vmatpush.msra.mxu0 0.0
        %411 = vmatpush.msra.mxu0 0.0
        %412 = vmatpush.msra.mxu0 0.0
        %413 = vmatpush.msra.mxu0 0.0
        %414 = vmatpush.msra.mxu0 0.0
        %415 = vmatpush.msra.mxu0 0.0
        %416 = vmatpush.msra.mxu0 0.0
        %417 = vmatpush.msra.mxu0 0.0
        %418 = vmatpush.msra.mxu0 0.0
        %419 = vmatpush.msra.mxu0 %v382
        %420 = vmatmul.f32.gmra.mxu0 %v375
        %v421 = vpop.f32.mrf.mxu0
        %v422 = vadd.f32 %v372, %v421
        %423 = vdwg.mxu0
        %v424 = vmax.f32 %v402, 0.0
        %v425 = vmax.f32 %v422, 0.0
        %v426 = vld [vmem:[#allocation5 + $0x28] sm:$0xff]
        %v427 = vld [vmem:[#allocation5 + $0x30] sm:$0x3f]
        %429 = vset.pattern.permute.xlu0 7
        %430 = vperm.xlu0 %429, %v426
        %v431 = vpop.permute.xlu0 %430
        %434 = vset.pattern.permute.xlu0 7
        %435 = vperm.xlu0 %434, %v427
        %v436 = vpop.permute.xlu0 %435
        %v438 = vsel %vm318, %v426, 0
        %v440 = vsel %vm318, %v427, 0
        %v443 = vsel %vm321, %v424, 0
        %v446 = vsel %vm321, %v425, 0
        %448 = vmatpush.msra.mxu0 0.0
        %449 = vmatpush.msra.mxu0 0.0
        %450 = vmatpush.msra.mxu0 0.0
        %451 = vmatpush.msra.mxu0 0.0
        %452 = vmatpush.msra.mxu0 0.0
        %453 = vmatpush.msra.mxu0 0.0
        %454 = vmatpush.msra.mxu0 0.0
        %455 = vmatpush.msra.mxu0 0.0
        %456 = vmatpush.msra.mxu0 0.0
        %457 = vmatpush.msra.mxu0 0.0
        %458 = vmatpush.msra.mxu0 0.0
        %459 = vmatpush.msra.mxu0 0.0
        %460 = vmatpush.msra.mxu0 0.0
        %461 = vmatpush.msra.mxu0 0.0
        %462 = vmatpush.msra.mxu0 0.0
        %463 = vmatpush.msra.mxu0 %v443
        %464 = vmatmul.f32.gmra.mxu0 %v438
        %v465 = vpop.f32.mrf.mxu0
        %v466 = vadd.f32 %v431, %v465
        %467 = vmatmul.f32.gmra.mxu0 %v440
        %v468 = vpop.f32.mrf.mxu0
        %v469 = vadd.f32 %v436, %v468
        %470 = vdwg.mxu0
        %471 = vmatpush.msra.mxu0 0.0
        %472 = vmatpush.msra.mxu0 0.0
        %473 = vmatpush.msra.mxu0 0.0
        %474 = vmatpush.msra.mxu0 0.0
        %475 = vmatpush.msra.mxu0 0.0
        %476 = vmatpush.msra.mxu0 0.0
        %477 = vmatpush.msra.mxu0 0.0
        %478 = vmatpush.msra.mxu0 0.0
        %479 = vmatpush.msra.mxu0 0.0
        %480 = vmatpush.msra.mxu0 0.0
        %481 = vmatpush.msra.mxu0 0.0
        %482 = vmatpush.msra.mxu0 0.0
        %483 = vmatpush.msra.mxu0 0.0
        %484 = vmatpush.msra.mxu0 0.0
        %485 = vmatpush.msra.mxu0 0.0
        %486 = vmatpush.msra.mxu0 %v446
        %487 = vmatmul.f32.gmra.mxu0 %v438
        %v488 = vpop.f32.mrf.mxu0
        %v489 = vadd.f32 %v431, %v488
        %490 = vmatmul.f32.gmra.mxu0 %v440
        %v491 = vpop.f32.mrf.mxu0
        %v492 = vadd.f32 %v436, %v491
        %493 = vdwg.mxu0
        %v494 = vmax.f32 %v466, 0.0
        %v495 = vmax.f32 %v489, 0.0
        %v496 = vmax.f32 %v469, 0.0
        %v497 = vmax.f32 %v492, 0.0
        %v498 = vld [vmem:[#allocation5 + $0x38] sm:$0xff]
        %v499 = vld [vmem:[#allocation5 + $0x40] sm:$0xff]
        %501 = vset.pattern.permute.xlu0 14
        %502 = vperm.xlu0 %501, %v498
        %v503 = vpop.permute.xlu0 %502
        %506 = vset.pattern.permute.xlu0 14
        %507 = vperm.xlu0 %506, %v499
        %v508 = vpop.permute.xlu0 %507
        %v510 = vsel %vm260, %v498, 0
        %v512 = vsel %vm260, %v499, 0
        %v515 = vsel %vm263, %v496, 0
        %v518 = vsel %vm263, %v497, 0
        %520 = vmatpush.msra.mxu0 0.0
        %521 = vmatpush.msra.mxu0 0.0
        %522 = vmatpush.msra.mxu0 0.0
        %523 = vmatpush.msra.mxu0 0.0
        %524 = vmatpush.msra.mxu0 0.0
        %525 = vmatpush.msra.mxu0 0.0
        %526 = vmatpush.msra.mxu0 0.0
        %527 = vmatpush.msra.mxu0 0.0
        %528 = vmatpush.msra.mxu0 0.0
        %529 = vmatpush.msra.mxu0 0.0
        %530 = vmatpush.msra.mxu0 0.0
        %531 = vmatpush.msra.mxu0 0.0
        %532 = vmatpush.msra.mxu0 0.0
        %533 = vmatpush.msra.mxu0 0.0
        %534 = vmatpush.msra.mxu0 %v515
        %535 = vmatpush.msra.mxu0 %v494
        %536 = vmatmul.f32.gmra.mxu0 %v510
        %v537 = vpop.f32.mrf.mxu0
        %v538 = vadd.f32 %v503, %v537
        %539 = vmatmul.f32.gmra.mxu0 %v512
        %v540 = vpop.f32.mrf.mxu0
        %v541 = vadd.f32 %v508, %v540
        %542 = vdwg.mxu0
        %543 = vmatpush.msra.mxu0 0.0
        %544 = vmatpush.msra.mxu0 0.0
        %545 = vmatpush.msra.mxu0 0.0
        %546 = vmatpush.msra.mxu0 0.0
        %547 = vmatpush.msra.mxu0 0.0
        %548 = vmatpush.msra.mxu0 0.0
        %549 = vmatpush.msra.mxu0 0.0
        %550 = vmatpush.msra.mxu0 0.0
        %551 = vmatpush.msra.mxu0 0.0
        %552 = vmatpush.msra.mxu0 0.0
        %553 = vmatpush.msra.mxu0 0.0
        %554 = vmatpush.msra.mxu0 0.0
        %555 = vmatpush.msra.mxu0 0.0
        %556 = vmatpush.msra.mxu0 0.0
        %557 = vmatpush.msra.mxu0 %v518
        %558 = vmatpush.msra.mxu0 %v495
        %559 = vmatmul.f32.gmra.mxu0 %v510
        %v560 = vpop.f32.mrf.mxu0
        %v561 = vadd.f32 %v503, %v560
        %562 = vmatmul.f32.gmra.mxu0 %v512
        %v563 = vpop.f32.mrf.mxu0
        %v564 = vadd.f32 %v508, %v563
        %565 = vdwg.mxu0
        %v566 = vxor.u32 %v538, 2147483648
        %v567 = vxor.u32 %v561, 2147483648
        %v568 = vxor.u32 %v541, 2147483648
        %v569 = vxor.u32 %v564, 2147483648
        %v570 = vmul.f32 %v566, 1.442695
        %v571 = vpow.pop %v570
        %v572 = vmul.f32 %v567, 1.442695
        %v573 = vpow.pop %v572
        %v574 = vmul.f32 %v568, 1.442695
        %v575 = vpow.pop %v574
        %v576 = vmul.f32 %v569, 1.442695
        %v577 = vpow.pop %v576
        %v578 = vadd.f32 %v571, 1.0
        %v579 = vadd.f32 %v573, 1.0
        %v580 = vadd.f32 %v575, 1.0
        %v581 = vadd.f32 %v577, 1.0
        %v582 = vrcp.pop %v578
        %v583 = vmul.f32 %v578, %v582
        %v584 = vsub.f32 1.0, %v583
        %v585 = vmul.f32 %v582, %v584
        %v586 = vadd.f32 %v582, %v585
        %vm587 = vweird.f32 %v578
        %vm588 = vweird.f32 %v582
        %vm589 = vmor %vm587, %vm588
        %v590 = vsel %vm589, %v582, %v586
        %v591 = vand.u32 2147483647, %v578
        %vm592 = vcmp.eq.f32.partialorder %v591, 8.507059e+37
        %v593 = vand.u32 %v578, 2147483648
        %v594 = vor.u32 1.1754944e-38, %v593
        %v595 = vsel %vm592, %v594, %v590
        %v596 = vmul.f32 1.0, %v595
        %v597 = vrcp.pop %v579
        %v598 = vmul.f32 %v579, %v597
        %v599 = vsub.f32 1.0, %v598
        %v600 = vmul.f32 %v597, %v599
        %v601 = vadd.f32 %v597, %v600
        %vm602 = vweird.f32 %v579
        %vm603 = vweird.f32 %v597
        %vm604 = vmor %vm602, %vm603
        %v605 = vsel %vm604, %v597, %v601
        %v606 = vand.u32 2147483647, %v579
        %vm607 = vcmp.eq.f32.partialorder %v606, 8.507059e+37
        %v608 = vand.u32 %v579, 2147483648
        %v609 = vor.u32 1.1754944e-38, %v608
        %v610 = vsel %vm607, %v609, %v605
        %v611 = vmul.f32 1.0, %v610
        %v612 = vrcp.pop %v580
        %v613 = vmul.f32 %v580, %v612
        %v614 = vsub.f32 1.0, %v613
        %v615 = vmul.f32 %v612, %v614
        %v616 = vadd.f32 %v612, %v615
        %vm617 = vweird.f32 %v580
        %vm618 = vweird.f32 %v612
        %vm619 = vmor %vm617, %vm618
        %v620 = vsel %vm619, %v612, %v616
        %v621 = vand.u32 2147483647, %v580
        %vm622 = vcmp.eq.f32.partialorder %v621, 8.507059e+37
        %v623 = vand.u32 %v580, 2147483648
        %v624 = vor.u32 1.1754944e-38, %v623
        %v625 = vsel %vm622, %v624, %v620
        %v626 = vmul.f32 1.0, %v625
        %v627 = vrcp.pop %v581
        %v628 = vmul.f32 %v581, %v627
        %v629 = vsub.f32 1.0, %v628
        %v630 = vmul.f32 %v627, %v629
        %v631 = vadd.f32 %v627, %v630
        %vm632 = vweird.f32 %v581
        %vm633 = vweird.f32 %v627
        %vm634 = vmor %vm632, %vm633
        %v635 = vsel %vm634, %v627, %v631
        %v636 = vand.u32 2147483647, %v581
        %vm637 = vcmp.eq.f32.partialorder %v636, 8.507059e+37
        %v638 = vand.u32 %v581, 2147483648
        %v639 = vor.u32 1.1754944e-38, %v638
        %v640 = vsel %vm637, %v639, %v635
        %v641 = vmul.f32 1.0, %v640
        %642 = vst [vmem:[%s180] sm:$0xff] %v596
        %643 = vst [vmem:[%s180 + $0x8] sm:$0xff] %v611
        %644 = vst [vmem:[%s180 + $0x10] sm:$0xff] %v626
        %645 = vst [vmem:[%s180 + $0x18] sm:$0xff] %v641
        %s646 = sand.u32 %s75, 1
        %s647 = scalar_lea.sflag [#allocation4], %s646
        %s648 = sand.u32 %s75, 1
        %s649 = smul.addr %s648, 32
        %s650 = scalar_lea.vmem [#allocation7], %s649
        // Predicated region
        $region37: #{autoencoder_forward_t.1} parent=27 // pred_check
          %p651 = pneg %p85
        $region38: #{autoencoder_forward_t.1} parent=27 // pred_check_branch
          %653 = sbr.rel (%p651) target = $region40
        $region39: #{autoencoder_forward_t.1} parent=27 // pred_region
          %s654 = smul.u32 2, %s20
          %656 = vsyncadd %s647, 0
          %s657 = smul.addr %s654, 8
          %s658 = scalar_lea.hbm %s2, %s657
          %s659 = sshll.u32 %s650, 4
          %s660 = int_to_ptr.vmem [resolvable:$true] %s659
          %s661 = sshll.u32 %s658, 4
          %s662 = int_to_ptr.hbm [resolvable:$true] %s661
          %667 = dma.vmem_to_hbm [thread:$0]  %s660, 512, %s662, %s647, 256, 512, 16
        $region40: #{autoencoder_forward_t.1} parent=27 // pred_fallthru
          _
      $region28: #{autoencoder_forward_t.1} parent=5 // pred_fallthru
        _
      %p668 = scmp.le.s32.totalorder 2, %s15
      // Predicated region
      $region41: #{autoencoder_forward_t.1} parent=5 // pred_check
        %p669 = pneg %p668
      $region42: #{autoencoder_forward_t.1} parent=5 // pred_check_branch
        %671 = sbr.rel (%p669) target = $region44
      $region43: #{autoencoder_forward_t.1} parent=5 // pred_region
        %s672 = ssub.s32 %s15, 2
        // Predicated region
        $region45: #{autoencoder_forward_t.1} parent=43 // pred_check
          %p673 = pneg %p91
        $region46: #{autoencoder_forward_t.1} parent=43 // pred_check_branch
          %675 = sbr.rel (%p673) target = $region48
        $region47: #{autoencoder_forward_t.1} parent=43 // pred_region
          %s676 = sand.u32 %s76, 1
          %s677 = scalar_lea.sflag [#allocation4], %s676
          %s678 = sand.u32 %s76, 1
          %s679 = smul.addr %s678, 32
          %s680 = scalar_lea.vmem [#allocation7], %s679
          %682 = dma.done %s677, 512
        $region48: #{autoencoder_forward_t.1} parent=43 // pred_fallthru
          _
      $region44: #{autoencoder_forward_t.1} parent=5 // pred_fallthru
        _
    $region6: #{autoencoder_forward_t.1} parent=1 // loop_footer
      %s19 = sadd.s32 1, %s15
    $region7: #{autoencoder_forward_t.1} parent=1 // loop_footer_branch
      %14 = sbr.rel target = $region3
    $region8: #{autoencoder_forward_t.1} parent=1 // loop_exit
      _
    %683 = vsyncpa [#allocation3], 1
    %s684 = scalar_lea.sflag [#allocation3], 1
    %685 = vsyncpa %s684, 1
    %686 = vsyncpa [#allocation6], 1
    %687 = vsyncpa [#allocation4], 1
    %s688 = scalar_lea.sflag [#allocation4], 1
    %689 = vsyncpa %s688, 1

</llo_original>
